<compile_context>
chip_gen: v5e
topology: v5e:2x2
jax: 0.10.0
libtpu: 0.0.40
codegen_flags: <defaults>
</compile_context>

<pallas_src>
import functools

import jax
import jax.numpy as jnp
from jax.experimental import pallas as pl
from jax.experimental.pallas import tpu as pltpu

_LANE = 128


def _dsconv_kernel(x_hbm, wdw_ref, b1_ref, wpw_ref, b2_ref, o_ref, slab, sem,
                   *, stride, th, wo, slab_h):
    """One (image, row-tile) step of fused DW3x3+BN+ReLU -> PW1x1+BN+ReLU.

    x_hbm  : (N, Hp, Wp, Cp)   padded NHWC input, left in HBM (pl.ANY)
    wdw_ref: (3, 3, Cp)        depthwise weights, BN1 scale pre-folded (f32)
    b1_ref : (1, Cp)           folded BN1 bias (f32)
    wpw_ref: (Cp, Cop)         pointwise weights, BN2 scale pre-folded
    b2_ref : (1, Cop)          folded BN2 bias (f32)
    o_ref  : (1, th, Wo, Cop)  output tile (f32)
    slab   : (slab_h, Wp, Cp)  VMEM scratch for the halo'd input row slab
    sem    : DMA semaphore
    """
    n = pl.program_id(0)
    r = pl.program_id(1)

    # Manual DMA of the halo'd row slab for this (image, row-tile).
    row0 = r * (th * stride)
    copy = pltpu.make_async_copy(x_hbm.at[n, pl.ds(row0, slab_h)], slab, sem)
    copy.start()
    copy.wait()

    cin = slab.shape[-1]
    wdw = wdw_ref[...]                                   # (3, 3, Cp)

    # Depthwise 3x3: 9 VPU FMAs with f32 accumulation.  Taps are read straight
    # from the VMEM slab; stride>1 uses strided pl.ds (no reshape decimation).
    acc = jnp.zeros((th, wo, cin), jnp.float32)
    for kh in range(3):
        for kw in range(3):
            if stride == 1:
                tap = slab[kh:kh + th, kw:kw + wo, :]
            else:
                tap = slab[pl.ds(kh, th, stride=stride),
                           pl.ds(kw, wo, stride=stride), :]
            acc = acc + tap.astype(jnp.float32) * wdw[kh, kw].reshape(1, 1, cin)

    # BN1 bias + ReLU (scale already folded into wdw).
    y = jnp.maximum(acc + b1_ref[...].reshape(1, 1, cin), 0.0)

    # Pointwise 1x1 conv == lane-dense MXU matmul over (padded) channels.
    y2 = jnp.dot(y.reshape(th * wo, cin).astype(wpw_ref.dtype), wpw_ref[...],
                 preferred_element_type=jnp.float32)

    # BN2 bias + ReLU (scale folded into wpw).
    z = jnp.maximum(y2 + b2_ref[...], 0.0)
    o_ref[0] = z.reshape(th, wo, -1).astype(o_ref.dtype)


def _pick_row_tile(Ho, Wo, Wp, stride, cp, cop, in_bytes, budget=24 << 20):
    """Largest row tile whose per-step VMEM footprint stays under `budget`
    (conservative so it also fits v7x's 64 MiB VMEM with double buffering)."""
    th = min(8, Ho)
    cand = 8
    while cand <= Ho:
        slab_h = (cand - 1) * stride + 3
        est = (slab_h * Wp * cp * in_bytes          # input slab scratch
               + 2 * cand * Wo * cop * 4            # double-buffered output block
               + cand * Wo * cp * 4                 # f32 depthwise accumulator
               + cand * Wo * cp * in_bytes          # y cast for the MXU
               + cand * Wo * cop * 4                # pointwise result
               + 9 * cp * 4 + cp * cop * in_bytes + 2 * cop * 4)
        if est > budget:
            break
        th = cand
        cand *= 2
    return th


def dsconv2d_forward(x_nchw, params, *, stride, compute_dtype=jnp.bfloat16,
                     row_tile=None):
    """DSConv2d forward. x_nchw: (N, C, H, W) f32. Returns (N, Cout, Ho, Wo) f32."""
    (wdw, gamma1, beta1, mean1, var1,
     wpw, gamma2, beta2, mean2, var2) = params
    eps = 1e-5

    # Fold BN (eval mode) into per-channel scale/bias, then fold the scales
    # into the conv weights so only bias+ReLU remains in the kernel.
    s1 = gamma1 / jnp.sqrt(var1 + eps)
    b1 = beta1 - mean1 * s1
    s2 = gamma2 / jnp.sqrt(var2 + eps)
    b2 = beta2 - mean2 * s2

    N, C, H, W = x_nchw.shape
    Cout = wpw.shape[1]
    k, pad = 3, 1
    Ho = (H + 2 * pad - k) // stride + 1
    Wo = (W + 2 * pad - k) // stride + 1

    # Lane-dense channel padding (128-lane axis + MXU K/N dims fully used).
    Cp = ((C + _LANE - 1) // _LANE) * _LANE
    Cop = ((Cout + _LANE - 1) // _LANE) * _LANE
    Wp = W + 2
    in_bytes = jnp.dtype(compute_dtype).itemsize

    if row_tile is None:
        row_tile = _pick_row_tile(Ho, Wo, Wp, stride, Cp, Cop, in_bytes)
    TH = max(1, min(row_tile, Ho))
    n_tiles = pl.cdiv(Ho, TH)
    slab_h = (TH - 1) * stride + 3
    Hp = max(H + 2, (n_tiles - 1) * TH * stride + slab_h)

    # Fold + pad parameters (tiny, host-side, done once).
    wdw_f = jnp.pad((wdw * s1[None, None, :]).astype(jnp.float32),
                    ((0, 0), (0, 0), (0, Cp - C)))
    b1_p = jnp.pad(b1, (0, Cp - C)).reshape(1, Cp).astype(jnp.float32)
    wpw_f = jnp.pad((wpw * s2[None, :]).astype(compute_dtype),
                    ((0, Cp - C), (0, Cop - Cout)))
    b2_p = jnp.pad(b2, (0, Cop - Cout)).reshape(1, Cop).astype(jnp.float32)

    # NHWC + zero halo + channel pad (single pad/transpose round trip).
    x = jnp.transpose(x_nchw, (0, 2, 3, 1)).astype(compute_dtype)
    x_pad = jnp.pad(x, ((0, 0), (pad, Hp - H - pad), (pad, Wp - W - pad),
                        (0, Cp - C)))

    kernel = functools.partial(_dsconv_kernel, stride=stride, th=TH, wo=Wo,
                               slab_h=slab_h)

    out_nhwc = pl.pallas_call(
        kernel,
        out_shape=jax.ShapeDtypeStruct((N, Ho, Wo, Cop), jnp.float32),
        grid=(N, n_tiles),
        in_specs=[
            pl.BlockSpec(memory_space=pl.ANY),                   # x stays in HBM
            pl.BlockSpec((3, 3, Cp), lambda n, r: (0, 0, 0)),    # resident weights
            pl.BlockSpec((1, Cp), lambda n, r: (0, 0)),
            pl.BlockSpec((Cp, Cop), lambda n, r: (0, 0)),
            pl.BlockSpec((1, Cop), lambda n, r: (0, 0)),
        ],
        out_specs=pl.BlockSpec((1, TH, Wo, Cop), lambda n, r: (n, r, 0, 0)),
        scratch_shapes=[
            pltpu.VMEM((slab_h, Wp, Cp), compute_dtype),
            pltpu.SemaphoreType.DMA(()),
        ],
        compiler_params=pltpu.CompilerParams(
            dimension_semantics=("parallel", "parallel"),
            vmem_limit_bytes=48 * 1024 * 1024,
        ),
    )(x_pad, wdw_f, b1_p, wpw_f, b2_p)

    out = out_nhwc[..., :Cout]
    return jnp.transpose(out, (0, 3, 1, 2))  # back to NCHW


def _reference(x_nchw, params, *, stride):
    """Pure-JAX (XLA conv) reference with identical eval-mode semantics."""
    (wdw, gamma1, beta1, mean1, var1,
     wpw, gamma2, beta2, mean2, var2) = params
    eps = 1e-5
    C = x_nchw.shape[1]

    s1 = gamma1 / jnp.sqrt(var1 + eps)
    b1 = beta1 - mean1 * s1
    s2 = gamma2 / jnp.sqrt(var2 + eps)
    b2 = beta2 - mean2 * s2

    w_dw = jnp.transpose(wdw, (2, 0, 1))[:, None, :, :]          # (C,1,3,3)
    y = jax.lax.conv_general_dilated(
        x_nchw, w_dw, (stride, stride), ((1, 1), (1, 1)),
        feature_group_count=C, dimension_numbers=("NCHW", "OIHW", "NCHW"))
    y = jnp.maximum(y * s1[None, :, None, None] + b1[None, :, None, None], 0.0)

    w_pw = jnp.transpose(wpw, (1, 0))[:, :, None, None]          # (Cout,Cin,1,1)
    z = jax.lax.conv_general_dilated(
        y, w_pw, (1, 1), ((0, 0), (0, 0)),
        dimension_numbers=("NCHW", "OIHW", "NCHW"))
    z = jnp.maximum(z * s2[None, :, None, None] + b2[None, :, None, None], 0.0)
    return z


def make_params(key, in_channels, out_channels):
    """Deterministic synthetic parameters matching the PyTorch module's shapes."""
    k1, k2 = jax.random.split(key)
    wdw = jax.random.normal(k1, (3, 3, in_channels), jnp.float32) * 0.2
    wpw = jax.random.normal(k2, (in_channels, out_channels), jnp.float32) * 0.2
    gamma1 = 1.0 + 0.10 * jnp.arange(in_channels, dtype=jnp.float32)
    beta1 = 0.05 * jnp.arange(in_channels, dtype=jnp.float32)
    mean1 = 0.01 * jnp.arange(in_channels, dtype=jnp.float32)
    var1 = 1.0 + 0.02 * jnp.arange(in_channels, dtype=jnp.float32)
    gamma2 = 1.0 + 0.05 * jnp.arange(out_channels, dtype=jnp.float32)
    beta2 = -0.03 * jnp.arange(out_channels, dtype=jnp.float32)
    mean2 = 0.02 * jnp.arange(out_channels, dtype=jnp.float32)
    var2 = 1.0 + 0.01 * jnp.arange(out_channels, dtype=jnp.float32)
    return (wdw, gamma1, beta1, mean1, var1, wpw, gamma2, beta2, mean2, var2)


if __name__ == "__main__":
    N, C_in, C_out, H, W = 2, 4, 8, 16, 16

    key = jax.random.PRNGKey(0)
    kx, kp = jax.random.split(key)
    x = jax.random.normal(kx, (N, C_in, H, W), jnp.float32)
    params = make_params(kp, C_in, C_out)

    # 1) f32 path, stride=1, forced row tiling (2 row tiles) -- tight tolerance.
    out = jax.block_until_ready(
        dsconv2d_forward(x, params, stride=1, compute_dtype=jnp.float32,
                         row_tile=8))
    ref = _reference(x, params, stride=1)
    assert out.shape == ref.shape, (out.shape, ref.shape)
    assert jnp.allclose(out, ref, atol=1e-4, rtol=1e-4), \
        float(jnp.max(jnp.abs(out - ref)))

    # 2) f32 path, stride=2 (strided-tap path) with row tiling.
    out2 = jax.block_until_ready(
        dsconv2d_forward(x, params, stride=2, compute_dtype=jnp.float32,
                         row_tile=4))
    ref2 = _reference(x, params, stride=2)
    assert out2.shape == ref2.shape, (out2.shape, ref2.shape)
    assert jnp.allclose(out2, ref2, atol=1e-4, rtol=1e-4), \
        float(jnp.max(jnp.abs(out2 - ref2)))

    # 3) bf16 storage/MXU path (auto row tile) -- looser tolerance.
    out3 = jax.block_until_ready(
        dsconv2d_forward(x, params, stride=1, compute_dtype=jnp.bfloat16))
    assert out3.shape == ref.shape, (out3.shape, ref.shape)
    assert jnp.allclose(out3, ref, atol=1e-1, rtol=5e-2), \
        float(jnp.max(jnp.abs(out3 - ref)))

    print("KERNEL_OK")
</pallas_src>

<mosaic_0001>
module attributes {stable_mosaic.version = 11 : i64} {
  func.func @_dsconv_kernel(%arg0: i32, %arg1: i32, %arg2: memref<2x18x18x128xf32, #tpu.memory_space<any>>, %arg3: memref<3x3x128xf32, #tpu.memory_space<vmem>>, %arg4: memref<1x128xf32, #tpu.memory_space<vmem>>, %arg5: memref<128x128xf32, #tpu.memory_space<vmem>>, %arg6: memref<1x128xf32, #tpu.memory_space<vmem>>, %arg7: memref<1x8x16x128xf32, #tpu.memory_space<vmem>>, %arg8: memref<10x18x128xf32, #tpu.memory_space<vmem>>, %arg9: memref<!tpu.dma_semaphore, #tpu.memory_space<semaphore_mem>>) attributes {dimension_semantics = [#tpu.dimension_semantics<parallel>, #tpu.dimension_semantics<parallel>], iteration_bounds = array<i64: 2, 2>, scalar_prefetch = 0 : i64, scratch_operands = 2 : i64, tpu.core_type = #tpu.core_type<tc>, window_params = [{}, {pipeline_mode = #tpu.pipeline_mode<synchronous>, transform_indices = @transform_1, window_bounds = array<i64: 3, 3, 128>}, {pipeline_mode = #tpu.pipeline_mode<synchronous>, transform_indices = @transform_2, window_bounds = array<i64: 1, 128>}, {pipeline_mode = #tpu.pipeline_mode<synchronous>, transform_indices = @transform_3, window_bounds = array<i64: 128, 128>}, {pipeline_mode = #tpu.pipeline_mode<synchronous>, transform_indices = @transform_4, window_bounds = array<i64: 1, 128>}, {transform_indices = @transform_5, window_bounds = array<i64: 1, 8, 16, 128>}]} {
    %c8_i32 = arith.constant 8 : i32
    %0 = arith.muli %arg1, %c8_i32 : i32
    %c0_i32 = arith.constant 0 : i32
    %c0_i32_0 = arith.constant 0 : i32
    %1 = tpu.memref_slice %arg2[%arg0, %0, %c0_i32, %c0_i32_0] : memref<2x18x18x128xf32, #tpu.memory_space<any>> -> memref<1x10x18x128xf32, #tpu.memory_space<any>>
    %2 = tpu.memref_squeeze %1 : memref<1x10x18x128xf32, #tpu.memory_space<any>> -> memref<10x18x128xf32, #tpu.memory_space<any>>
    tpu.enqueue_dma source(%2 : memref<10x18x128xf32, #tpu.memory_space<any>>) target(%arg8 : memref<10x18x128xf32, #tpu.memory_space<vmem>>) target_semaphore(%arg9 : memref<!tpu.dma_semaphore, #tpu.memory_space<semaphore_mem>>)
    %c0_i32_1 = arith.constant 0 : i32
    %c0_i32_2 = arith.constant 0 : i32
    %3 = tpu.memref_slice %arg2[%arg0, %0, %c0_i32_1, %c0_i32_2] : memref<2x18x18x128xf32, #tpu.memory_space<any>> -> memref<1x10x18x128xf32, #tpu.memory_space<any>>
    %4 = tpu.memref_squeeze %3 : memref<1x10x18x128xf32, #tpu.memory_space<any>> -> memref<10x18x128xf32, #tpu.memory_space<any>>
    tpu.wait_dma2 semaphore(%arg9 : memref<!tpu.dma_semaphore, #tpu.memory_space<semaphore_mem>>) src(%4 : memref<10x18x128xf32, #tpu.memory_space<any>>) dst(%arg8 : memref<10x18x128xf32, #tpu.memory_space<vmem>>)
    %c0 = arith.constant 0 : index
    %c0_3 = arith.constant 0 : index
    %c0_4 = arith.constant 0 : index
    %5 = vector.load %arg3[%c0, %c0_3, %c0_4] : memref<3x3x128xf32, #tpu.memory_space<vmem>>, vector<3x3x128xf32>
    %cst = arith.constant 0.000000e+00 : f32
    %6 = vector.broadcast %cst : f32 to vector<8x16x128xf32>
    %c0_5 = arith.constant 0 : index
    %c0_6 = arith.constant 0 : index
    %c0_7 = arith.constant 0 : index
    %7 = vector.load %arg8[%c0_5, %c0_6, %c0_7] : memref<10x18x128xf32, #tpu.memory_space<vmem>>, vector<8x16x128xf32>
    %8 = vector.extract_strided_slice %5 {offsets = [0, 0, 0], sizes = [1, 1, 128], strides = [1, 1, 1]} : vector<3x3x128xf32> to vector<1x1x128xf32>
    %9 = vector.shape_cast %8 : vector<1x1x128xf32> to vector<128xf32>
    %10 = vector.shape_cast %9 : vector<128xf32> to vector<1x1x128xf32>
    %11 = vector.broadcast %10 : vector<1x1x128xf32> to vector<8x16x128xf32>
    %12 = arith.mulf %7, %11 : vector<8x16x128xf32>
    %13 = arith.addf %6, %12 : vector<8x16x128xf32>
    %c0_8 = arith.constant 0 : index
    %c1 = arith.constant 1 : index
    %c0_9 = arith.constant 0 : index
    %14 = vector.load %arg8[%c0_8, %c1, %c0_9] : memref<10x18x128xf32, #tpu.memory_space<vmem>>, vector<8x16x128xf32>
    %15 = vector.extract_strided_slice %5 {offsets = [0, 1, 0], sizes = [1, 1, 128], strides = [1, 1, 1]} : vector<3x3x128xf32> to vector<1x1x128xf32>
    %16 = vector.shape_cast %15 : vector<1x1x128xf32> to vector<128xf32>
    %17 = vector.shape_cast %16 : vector<128xf32> to vector<1x1x128xf32>
    %18 = vector.broadcast %17 : vector<1x1x128xf32> to vector<8x16x128xf32>
    %19 = arith.mulf %14, %18 : vector<8x16x128xf32>
    %20 = arith.addf %13, %19 : vector<8x16x128xf32>
    %c0_10 = arith.constant 0 : index
    %c2 = arith.constant 2 : index
    %c0_11 = arith.constant 0 : index
    %21 = vector.load %arg8[%c0_10, %c2, %c0_11] : memref<10x18x128xf32, #tpu.memory_space<vmem>>, vector<8x16x128xf32>
    %22 = vector.extract_strided_slice %5 {offsets = [0, 2, 0], sizes = [1, 1, 128], strides = [1, 1, 1]} : vector<3x3x128xf32> to vector<1x1x128xf32>
    %23 = vector.shape_cast %22 : vector<1x1x128xf32> to vector<128xf32>
    %24 = vector.shape_cast %23 : vector<128xf32> to vector<1x1x128xf32>
    %25 = vector.broadcast %24 : vector<1x1x128xf32> to vector<8x16x128xf32>
    %26 = arith.mulf %21, %25 : vector<8x16x128xf32>
    %27 = arith.addf %20, %26 : vector<8x16x128xf32>
    %c1_12 = arith.constant 1 : index
    %c0_13 = arith.constant 0 : index
    %c0_14 = arith.constant 0 : index
    %28 = vector.load %arg8[%c1_12, %c0_13, %c0_14] : memref<10x18x128xf32, #tpu.memory_space<vmem>>, vector<8x16x128xf32>
    %29 = vector.extract_strided_slice %5 {offsets = [1, 0, 0], sizes = [1, 1, 128], strides = [1, 1, 1]} : vector<3x3x128xf32> to vector<1x1x128xf32>
    %30 = vector.shape_cast %29 : vector<1x1x128xf32> to vector<128xf32>
    %31 = vector.shape_cast %30 : vector<128xf32> to vector<1x1x128xf32>
    %32 = vector.broadcast %31 : vector<1x1x128xf32> to vector<8x16x128xf32>
    %33 = arith.mulf %28, %32 : vector<8x16x128xf32>
    %34 = arith.addf %27, %33 : vector<8x16x128xf32>
    %c1_15 = arith.constant 1 : index
    %c1_16 = arith.constant 1 : index
    %c0_17 = arith.constant 0 : index
    %35 = vector.load %arg8[%c1_15, %c1_16, %c0_17] : memref<10x18x128xf32, #tpu.memory_space<vmem>>, vector<8x16x128xf32>
    %36 = vector.extract_strided_slice %5 {offsets = [1, 1, 0], sizes = [1, 1, 128], strides = [1, 1, 1]} : vector<3x3x128xf32> to vector<1x1x128xf32>
    %37 = vector.shape_cast %36 : vector<1x1x128xf32> to vector<128xf32>
    %38 = vector.shape_cast %37 : vector<128xf32> to vector<1x1x128xf32>
    %39 = vector.broadcast %38 : vector<1x1x128xf32> to vector<8x16x128xf32>
    %40 = arith.mulf %35, %39 : vector<8x16x128xf32>
    %41 = arith.addf %34, %40 : vector<8x16x128xf32>
    %c1_18 = arith.constant 1 : index
    %c2_19 = arith.constant 2 : index
    %c0_20 = arith.constant 0 : index
    %42 = vector.load %arg8[%c1_18, %c2_19, %c0_20] : memref<10x18x128xf32, #tpu.memory_space<vmem>>, vector<8x16x128xf32>
    %43 = vector.extract_strided_slice %5 {offsets = [1, 2, 0], sizes = [1, 1, 128], strides = [1, 1, 1]} : vector<3x3x128xf32> to vector<1x1x128xf32>
    %44 = vector.shape_cast %43 : vector<1x1x128xf32> to vector<128xf32>
    %45 = vector.shape_cast %44 : vector<128xf32> to vector<1x1x128xf32>
    %46 = vector.broadcast %45 : vector<1x1x128xf32> to vector<8x16x128xf32>
    %47 = arith.mulf %42, %46 : vector<8x16x128xf32>
    %48 = arith.addf %41, %47 : vector<8x16x128xf32>
    %c2_21 = arith.constant 2 : index
    %c0_22 = arith.constant 0 : index
    %c0_23 = arith.constant 0 : index
    %49 = vector.load %arg8[%c2_21, %c0_22, %c0_23] : memref<10x18x128xf32, #tpu.memory_space<vmem>>, vector<8x16x128xf32>
    %50 = vector.extract_strided_slice %5 {offsets = [2, 0, 0], sizes = [1, 1, 128], strides = [1, 1, 1]} : vector<3x3x128xf32> to vector<1x1x128xf32>
    %51 = vector.shape_cast %50 : vector<1x1x128xf32> to vector<128xf32>
    %52 = vector.shape_cast %51 : vector<128xf32> to vector<1x1x128xf32>
    %53 = vector.broadcast %52 : vector<1x1x128xf32> to vector<8x16x128xf32>
    %54 = arith.mulf %49, %53 : vector<8x16x128xf32>
    %55 = arith.addf %48, %54 : vector<8x16x128xf32>
    %c2_24 = arith.constant 2 : index
    %c1_25 = arith.constant 1 : index
    %c0_26 = arith.constant 0 : index
    %56 = vector.load %arg8[%c2_24, %c1_25, %c0_26] : memref<10x18x128xf32, #tpu.memory_space<vmem>>, vector<8x16x128xf32>
    %57 = vector.extract_strided_slice %5 {offsets = [2, 1, 0], sizes = [1, 1, 128], strides = [1, 1, 1]} : vector<3x3x128xf32> to vector<1x1x128xf32>
    %58 = vector.shape_cast %57 : vector<1x1x128xf32> to vector<128xf32>
    %59 = vector.shape_cast %58 : vector<128xf32> to vector<1x1x128xf32>
    %60 = vector.broadcast %59 : vector<1x1x128xf32> to vector<8x16x128xf32>
    %61 = arith.mulf %56, %60 : vector<8x16x128xf32>
    %62 = arith.addf %55, %61 : vector<8x16x128xf32>
    %c2_27 = arith.constant 2 : index
    %c2_28 = arith.constant 2 : index
    %c0_29 = arith.constant 0 : index
    %63 = vector.load %arg8[%c2_27, %c2_28, %c0_29] : memref<10x18x128xf32, #tpu.memory_space<vmem>>, vector<8x16x128xf32>
    %64 = vector.extract_strided_slice %5 {offsets = [2, 2, 0], sizes = [1, 1, 128], strides = [1, 1, 1]} : vector<3x3x128xf32> to vector<1x1x128xf32>
    %65 = vector.shape_cast %64 : vector<1x1x128xf32> to vector<128xf32>
    %66 = vector.shape_cast %65 : vector<128xf32> to vector<1x1x128xf32>
    %67 = vector.broadcast %66 : vector<1x1x128xf32> to vector<8x16x128xf32>
    %68 = arith.mulf %63, %67 : vector<8x16x128xf32>
    %69 = arith.addf %62, %68 : vector<8x16x128xf32>
    %c0_30 = arith.constant 0 : index
    %c0_31 = arith.constant 0 : index
    %70 = vector.load %arg4[%c0_30, %c0_31] : memref<1x128xf32, #tpu.memory_space<vmem>>, vector<1x128xf32>
    %71 = vector.shape_cast %70 : vector<1x128xf32> to vector<1x1x128xf32>
    %72 = vector.broadcast %71 : vector<1x1x128xf32> to vector<8x16x128xf32>
    %73 = arith.addf %69, %72 : vector<8x16x128xf32>
    %cst_32 = arith.constant 0.000000e+00 : f32
    %74 = vector.broadcast %cst_32 : f32 to vector<8x16x128xf32>
    %75 = arith.maximumf %73, %74 : vector<8x16x128xf32>
    %76 = vector.shape_cast %75 : vector<8x16x128xf32> to vector<128x128xf32>
    %c0_33 = arith.constant 0 : index
    %c0_34 = arith.constant 0 : index
    %77 = vector.load %arg5[%c0_33, %c0_34] : memref<128x128xf32, #tpu.memory_space<vmem>>, vector<128x128xf32>
    %cst_35 = arith.constant dense<0.000000e+00> : vector<128x128xf32>
    %78 = tpu.matmul %76, %77, %cst_35 {dimension_numbers = #tpu.dot_dimension_numbers<[1], [0], [0], [1], [0, 0, 1, 1], [], []>} : vector<128x128xf32>, vector<128x128xf32>, vector<128x128xf32> -> vector<128x128xf32>
    %c0_36 = arith.constant 0 : index
    %c0_37 = arith.constant 0 : index
    %79 = vector.load %arg6[%c0_36, %c0_37] : memref<1x128xf32, #tpu.memory_space<vmem>>, vector<1x128xf32>
    %80 = vector.broadcast %79 : vector<1x128xf32> to vector<128x128xf32>
    %81 = arith.addf %78, %80 : vector<128x128xf32>
    %cst_38 = arith.constant 0.000000e+00 : f32
    %82 = vector.broadcast %cst_38 : f32 to vector<128x128xf32>
    %83 = arith.maximumf %81, %82 : vector<128x128xf32>
    %84 = vector.shape_cast %83 : vector<128x128xf32> to vector<8x16x128xf32>
    %c0_39 = arith.constant 0 : index
    %c0_40 = arith.constant 0 : index
    %c0_41 = arith.constant 0 : index
    %c0_42 = arith.constant 0 : index
    %85 = vector.load %arg7[%c0_39, %c0_40, %c0_41, %c0_42] : memref<1x8x16x128xf32, #tpu.memory_space<vmem>>, vector<1x8x16x128xf32>
    %86 = vector.shape_cast %85 : vector<1x8x16x128xf32> to vector<8x16x128xf32>
    %87 = vector.shape_cast %84 : vector<8x16x128xf32> to vector<1x8x16x128xf32>
    tpu.vector_store %arg7[%c0_39, %c0_40, %c0_41, %c0_42], %87 {strides = array<i32>} : memref<1x8x16x128xf32, #tpu.memory_space<vmem>>, vector<1x8x16x128xf32>,
    return
  }
  func.func @transform_1(%arg0: i32, %arg1: i32) -> (i32, i32, i32) {
    %c0_i32 = arith.constant 0 : i32
    %c0_i32_0 = arith.constant 0 : i32
    %c0_i32_1 = arith.constant 0 : i32
    %c0_i32_2 = arith.constant 0 : i32
    return %c0_i32, %c0_i32_0, %c0_i32_1 : i32, i32, i32
  }
  func.func @transform_2(%arg0: i32, %arg1: i32) -> (i32, i32) {
    %c0_i32 = arith.constant 0 : i32
    %c0_i32_0 = arith.constant 0 : i32
    %c0_i32_1 = arith.constant 0 : i32
    return %c0_i32, %c0_i32_0 : i32, i32
  }
  func.func @transform_3(%arg0: i32, %arg1: i32) -> (i32, i32) {
    %c0_i32 = arith.constant 0 : i32
    %c0_i32_0 = arith.constant 0 : i32
    %c0_i32_1 = arith.constant 0 : i32
    return %c0_i32, %c0_i32_0 : i32, i32
  }
  func.func @transform_4(%arg0: i32, %arg1: i32) -> (i32, i32) {
    %c0_i32 = arith.constant 0 : i32
    %c0_i32_0 = arith.constant 0 : i32
    %c0_i32_1 = arith.constant 0 : i32
    return %c0_i32, %c0_i32_0 : i32, i32
  }
  func.func @transform_5(%arg0: i32, %arg1: i32) -> (i32, i32, i32, i32) {
    %c0_i32 = arith.constant 0 : i32
    %c0_i32_0 = arith.constant 0 : i32
    %c0_i32_1 = arith.constant 0 : i32
    return %arg0, %arg1, %c0_i32, %c0_i32_0 : i32, i32, i32, i32
  }
}

</mosaic_0001>

<llo_original>
// kernel: tpu_custom_call.1
$region0: #{tpu_custom_call.1}
  #allocation0 [shape = 'u32[]', space=smem, size = 0x4, offset = 0x4, fixed_abs, tag = 'smem constant byte address 0x4 - core index']
  #allocation1 [shape = 'u32[72,128]{1,0:T(1,128)}', space=vmem, size = 0x9000, scoped, tag = 'internal scratch']
  #allocation2 [shape = 'f32[10,18,128]{2,1,0:T(8,128)}', space=vmem, size = 0x1e000, scoped, tag = 'scratch operand']
  #allocation3 [shape = 's32[1]{0}', space=sflag, size = 0x4, scoped, tag = 'scratch operand']
  #allocation6 [shape = 's32[]', space=sflag, size = 0x4, offset = 0, fixed_abs, tag = 'sflag constant byte address 0x0 - dummy sync flag']
  %s0 = inlined_call_operand.vmem [shape: f32[2,18,18,128], index: 0, kind: input, shape index: {}]
  %s1 = inlined_call_operand.vmem [shape: f32[3,3,128], index: 1, kind: input, shape index: {}]
  %s2 = inlined_call_operand.vmem [shape: f32[1,128], index: 2, kind: input, shape index: {}]
  %s3 = inlined_call_operand.vmem [shape: f32[128,128], index: 3, kind: input, shape index: {}]
  %s4 = inlined_call_operand.vmem [shape: f32[1,128], index: 4, kind: input, shape index: {}]
  %s5 = inlined_call_operand.hbm [shape: f32[2,16,16,128], index: 5, kind: output, shape index: {}]
  %s6 = sld [smem:[#allocation0]]
  $region71: #{tpu_custom_call.1} parent=0
    _
  %s8 = ssub.s32 1, %s6
  %s9 = scalar_select 0, %s8, %s6
  $region1: #{tpu_custom_call.1} parent=0
    #allocation4 [shape = 'u8[131072]{0}', space=vmem, size = 0x20000, scoped, tag = 'output window, operand 0']
    #allocation5 [shape = 's32[2]{0}', space=sflag, size = 0x8, scoped, tag = 'scoped memory for tpu_custom_call.1']
    %10 = vsyncpa [#allocation5], 0
    %s11 = scalar_lea.sflag [#allocation5], 1
    %12 = vsyncpa %s11, 0
    loop: start=0, step=1, limit=6
    $region2: #{tpu_custom_call.1} parent=1 // loop_pre_header
      _
    $region3: #{tpu_custom_call.1} parent=1 // loop_header
      %s14 = sphi 0, %s18
      %p15 = scmp.ge.s32.totalorder %s14, 6
      %s21 = sphi 0, %s33
      %s22 = sphi 0, %s29
      %s23 = sphi 0, %s21
      %s24 = sphi 0, %s22
      %s25 = sphi 0, %s23
      %s26 = sphi 0, %s24
      %s34 = sphi 0, %s34
      %s36 = sphi 0, %s34
      %s37 = sphi 0, %s36
      %s51 = sphi 0, %s37
      %s55 = sphi 0, %s55
      %s57 = sphi 0, %s55
      %s58 = sphi 0, %s57
      %s72 = sphi 0, %s58
      %s76 = sphi 0, %s76
      %s78 = sphi 0, %s76
      %s79 = sphi 0, %s78
      %s93 = sphi 0, %s79
      %s97 = sphi 0, %s97
      %s99 = sphi 0, %s97
      %s100 = sphi 0, %s99
      %s114 = sphi 0, %s100
      %s122 = sphi 0, %s124
      %s125 = sphi 0, %s122
      %s126 = sphi 0, %s125
      %s142 = sphi 0, %s126
    $region4: #{tpu_custom_call.1} parent=1 // loop_header_branch
      %17 = sbr.rel (%p15) target = $region8
    $region5: #{tpu_custom_call.1} parent=1 // loop_body
      %s19 = ssub.s32 %s14, 1
      %s20 = ssub.s32 %s14, 2
      %s27 = sadd.s32 1, %s22
      %p28 = scmp.ge.s32.totalorder %s27, 2
      %s29 = scalar_select %p28, 0, %s27
      %s30 = sadd.s32 1, %s21
      %s31 = scalar_select %p28, %s30, %s21
      %p32 = scmp.ge.s32.totalorder %s31, 2
      %s33 = scalar_select %p32, 0, %s31
      %s35 = sadd.s32 %s34, 1
      %p38 = scmp.eq.s32.totalorder %s14, 3
      %p39 = scmp.ne.s32.totalorder %s34, %s36
      %p40 = scmp.eq.s32.totalorder %s14, 0
      %p41 = por %p39, %p40
      %p42 = scmp.ne.s32.totalorder %s34, %s36
      %p43 = scmp.eq.s32.totalorder %s19, 3
      %p44 = por %p42, %p43
      %p45 = scmp.ne.s32.totalorder %s36, %s37
      %p46 = scmp.eq.s32.totalorder %s19, 0
      %p47 = por %p45, %p46
      %p48 = scmp.ne.s32.totalorder %s36, %s37
      %p49 = scmp.eq.s32.totalorder %s20, 3
      %p50 = por %p48, %p49
      %p52 = scmp.ne.s32.totalorder %s37, %s51
      %p53 = scmp.eq.s32.totalorder %s20, 0
      %p54 = por %p52, %p53
      %s56 = sadd.s32 %s55, 1
      %p59 = scmp.eq.s32.totalorder %s14, 3
      %p60 = scmp.ne.s32.totalorder %s55, %s57
      %p61 = scmp.eq.s32.totalorder %s14, 0
      %p62 = por %p60, %p61
      %p63 = scmp.ne.s32.totalorder %s55, %s57
      %p64 = scmp.eq.s32.totalorder %s19, 3
      %p65 = por %p63, %p64
      %p66 = scmp.ne.s32.totalorder %s57, %s58
      %p67 = scmp.eq.s32.totalorder %s19, 0
      %p68 = por %p66, %p67
      %p69 = scmp.ne.s32.totalorder %s57, %s58
      %p70 = scmp.eq.s32.totalorder %s20, 3
      %p71 = por %p69, %p70
      %p73 = scmp.ne.s32.totalorder %s58, %s72
      %p74 = scmp.eq.s32.totalorder %s20, 0
      %p75 = por %p73, %p74
      %s77 = sadd.s32 %s76, 1
      %p80 = scmp.eq.s32.totalorder %s14, 3
      %p81 = scmp.ne.s32.totalorder %s76, %s78
      %p82 = scmp.eq.s32.totalorder %s14, 0
      %p83 = por %p81, %p82
      %p84 = scmp.ne.s32.totalorder %s76, %s78
      %p85 = scmp.eq.s32.totalorder %s19, 3
      %p86 = por %p84, %p85
      %p87 = scmp.ne.s32.totalorder %s78, %s79
      %p88 = scmp.eq.s32.totalorder %s19, 0
      %p89 = por %p87, %p88
      %p90 = scmp.ne.s32.totalorder %s78, %s79
      %p91 = scmp.eq.s32.totalorder %s20, 3
      %p92 = por %p90, %p91
      %p94 = scmp.ne.s32.totalorder %s79, %s93
      %p95 = scmp.eq.s32.totalorder %s20, 0
      %p96 = por %p94, %p95
      %s98 = sadd.s32 %s97, 1
      %p101 = scmp.eq.s32.totalorder %s14, 3
      %p102 = scmp.ne.s32.totalorder %s97, %s99
      %p103 = scmp.eq.s32.totalorder %s14, 0
      %p104 = por %p102, %p103
      %p105 = scmp.ne.s32.totalorder %s97, %s99
      %p106 = scmp.eq.s32.totalorder %s19, 3
      %p107 = por %p105, %p106
      %p108 = scmp.ne.s32.totalorder %s99, %s100
      %p109 = scmp.eq.s32.totalorder %s19, 0
      %p110 = por %p108, %p109
      %p111 = scmp.ne.s32.totalorder %s99, %s100
      %p112 = scmp.eq.s32.totalorder %s20, 3
      %p113 = por %p111, %p112
      %p115 = scmp.ne.s32.totalorder %s100, %s114
      %p116 = scmp.eq.s32.totalorder %s20, 0
      %p117 = por %p115, %p116
      %s118 = ssub.s32 %s21, %s33
      %s119 = ssub.s32 %s22, %s29
      %s120 = sor.u32 %s118, %s119
      %p121 = scmp.eq.s32.totalorder %s120, 0
      %s123 = sadd.s32 %s122, 1
      %s124 = scalar_select %p121, %s122, %s123
      %p127 = pneg %p121
      %p128 = scmp.eq.s32.totalorder %s14, 3
      %p129 = por %p127, %p128
      %p130 = scmp.ne.s32.totalorder %s122, %s125
      %p131 = scmp.eq.s32.totalorder %s14, 0
      %p132 = por %p130, %p131
      %p133 = scmp.ne.s32.totalorder %s122, %s125
      %p134 = scmp.eq.s32.totalorder %s19, 3
      %p135 = por %p133, %p134
      %p136 = scmp.ne.s32.totalorder %s125, %s126
      %p137 = scmp.eq.s32.totalorder %s19, 0
      %p138 = por %p136, %p137
      %p139 = scmp.ne.s32.totalorder %s125, %s126
      %p140 = scmp.eq.s32.totalorder %s20, 3
      %p141 = por %p139, %p140
      %p143 = scmp.ne.s32.totalorder %s126, %s142
      %p144 = scmp.eq.s32.totalorder %s20, 0
      %p145 = por %p143, %p144
      %p146 = scmp.le.s32.totalorder 1, %s14
      %p147 = scmp.lt.s32.totalorder %s14, 5
      %p148 = pnand %p146, %p147
      %p149 = pneg %p148
      // Predicated region
      $region9: #{tpu_custom_call.1} parent=5 // pred_check
        _
      $region10: #{tpu_custom_call.1} parent=5 // pred_check_branch
        %151 = sbr.rel (%p148) target = $region12
      $region11: #{tpu_custom_call.1} parent=5 // pred_region
        %s152 = ssub.s32 %s14, 1
        // Predicated region
        $region13: #{tpu_custom_call.1} parent=11 // pred_check
          %p153 = pneg %p47
        $region14: #{tpu_custom_call.1} parent=11 // pred_check_branch
          %155 = sbr.rel (%p153) target = $region16
        $region15: #{tpu_custom_call.1} parent=11 // pred_region
          _
        $region16: #{tpu_custom_call.1} parent=11 // pred_fallthru
          _
        // Predicated region
        $region17: #{tpu_custom_call.1} parent=11 // pred_check
          %p156 = pneg %p68
        $region18: #{tpu_custom_call.1} parent=11 // pred_check_branch
          %158 = sbr.rel (%p156) target = $region20
        $region19: #{tpu_custom_call.1} parent=11 // pred_region
          _
        $region20: #{tpu_custom_call.1} parent=11 // pred_fallthru
          _
        // Predicated region
        $region21: #{tpu_custom_call.1} parent=11 // pred_check
          %p159 = pneg %p89
        $region22: #{tpu_custom_call.1} parent=11 // pred_check_branch
          %161 = sbr.rel (%p159) target = $region24
        $region23: #{tpu_custom_call.1} parent=11 // pred_region
          _
        $region24: #{tpu_custom_call.1} parent=11 // pred_fallthru
          _
        // Predicated region
        $region25: #{tpu_custom_call.1} parent=11 // pred_check
          %p162 = pneg %p110
        $region26: #{tpu_custom_call.1} parent=11 // pred_check_branch
          %164 = sbr.rel (%p162) target = $region28
        $region27: #{tpu_custom_call.1} parent=11 // pred_region
          _
        $region28: #{tpu_custom_call.1} parent=11 // pred_fallthru
          _
      $region12: #{tpu_custom_call.1} parent=5 // pred_fallthru
        _
      %p165 = scmp.lt.s32.totalorder %s14, 4
      // Predicated region
      $region29: #{tpu_custom_call.1} parent=5 // pred_check
        %p166 = pneg %p165
      $region30: #{tpu_custom_call.1} parent=5 // pred_check_branch
        %168 = sbr.rel (%p166) target = $region32
      $region31: #{tpu_custom_call.1} parent=5 // pred_region
        _
      $region32: #{tpu_custom_call.1} parent=5 // pred_fallthru
        _
      %p169 = scmp.le.s32.totalorder 1, %s14
      %p170 = scmp.lt.s32.totalorder %s14, 5
      %p171 = pnand %p169, %p170
      %p172 = pneg %p171
      // Predicated region
      $region33: #{tpu_custom_call.1} parent=5 // pred_check
        _
      $region34: #{tpu_custom_call.1} parent=5 // pred_check_branch
        %174 = sbr.rel (%p171) target = $region36
      $region35: #{tpu_custom_call.1} parent=5 // pred_region
        %s175 = ssub.s32 %s14, 1
        %p176 = pneg %p47
        %p177 = pneg %p44
        %p178 = pneg %p68
        %p179 = pneg %p65
        %p180 = pneg %p89
        %p181 = pneg %p86
        %p182 = pneg %p110
        %p183 = pneg %p107
        %p184 = pneg %p138
        %p185 = pneg %p135
        %s186 = sand.u32 %s125, 1
        %s187 = scalar_lea.sflag [#allocation5], %s186
        %s188 = sand.u32 %s125, 1
        %s189 = smul.addr %s188, 128
        %s190 = scalar_lea.vmem [#allocation4], %s189
        %s191 = smul.u32 8, %s24
        %s192 = smul.u32 %s24, 8
        %s193 = smul.u32 %s192, 24
        %s194 = smul.u32 %s23, 432
        %s195 = sadd.s32 %s193, %s194
        %s196 = scalar_lea.vmem %s0, %s195
        // Predicated region
        $region37: #{tpu_custom_call.1} parent=35 // pred_check
          _
        $region38: #{tpu_custom_call.1} parent=35 // pred_check_branch
          %198 = sbr.rel (0) target = $region40
        $region39: #{tpu_custom_call.1} parent=35 // pred_region
          %s199 = scalar_lea.vmem %s196, 16
          %s200 = scalar_lea.vmem [#allocation2], 16
          loop: start=0, step=1, limit=1
          $region41: #{tpu_custom_call.1} parent=39 // loop_pre_header
            _
          $region42: #{tpu_custom_call.1} parent=39 // loop_header
            %s202 = sphi 0, %s206
            %p203 = scmp.ge.s32.totalorder %s202, 1
            %s207 = sphi %s196, %s196
            %s208 = sphi [#allocation2], [#allocation2]
          $region43: #{tpu_custom_call.1} parent=39 // loop_header_branch
            %205 = sbr.rel (%p203) target = $region47
          $region44: #{tpu_custom_call.1} parent=39 // loop_body
            %v209 = vld [vmem:[%s207] sm:$0xff]
            %210 = vst [vmem:[%s208] sm:$0xff] %v209
            %v211 = vld [vmem:[%s207 + $0x8] sm:$0xff]
            %212 = vst [vmem:[%s208 + $0x8] sm:$0xff] %v211
            %v213 = vld [vmem:[%s207 + $0x18] sm:$0xff]
            %214 = vst [vmem:[%s208 + $0x18] sm:$0xff] %v213
            %v215 = vld [vmem:[%s207 + $0x20] sm:$0xff]
            %216 = vst [vmem:[%s208 + $0x20] sm:$0xff] %v215
            %v217 = vld [vmem:[%s207 + $0x30] sm:$0xff]
            %218 = vst [vmem:[%s208 + $0x30] sm:$0xff] %v217
            %v219 = vld [vmem:[%s207 + $0x38] sm:$0xff]
            %220 = vst [vmem:[%s208 + $0x38] sm:$0xff] %v219
            %v221 = vld [vmem:[%s207 + $0x48] sm:$0xff]
            %222 = vst [vmem:[%s208 + $0x48] sm:$0xff] %v221
            %v223 = vld [vmem:[%s207 + $0x50] sm:$0xff]
            %224 = vst [vmem:[%s208 + $0x50] sm:$0xff] %v223
            %v225 = vld [vmem:[%s207 + $0x60] sm:$0xff]
            %226 = vst [vmem:[%s208 + $0x60] sm:$0xff] %v225
            %v227 = vld [vmem:[%s207 + $0x68] sm:$0xff]
            %228 = vst [vmem:[%s208 + $0x68] sm:$0xff] %v227
            %v229 = vld [vmem:[%s207 + $0x78] sm:$0xff]
            %230 = vst [vmem:[%s208 + $0x78] sm:$0xff] %v229
            %v231 = vld [vmem:[%s207 + $0x80] sm:$0xff]
            %232 = vst [vmem:[%s208 + $0x80] sm:$0xff] %v231
            %v233 = vld [vmem:[%s207 + $0x90] sm:$0xff]
            %234 = vst [vmem:[%s208 + $0x90] sm:$0xff] %v233
            %v235 = vld [vmem:[%s207 + $0x98] sm:$0xff]
            %236 = vst [vmem:[%s208 + $0x98] sm:$0xff] %v235
            %v237 = vld [vmem:[%s207 + $0xa8] sm:$0xff]
            %238 = vst [vmem:[%s208 + $0xa8] sm:$0xff] %v237
            %v239 = vld [vmem:[%s207 + $0xb0] sm:$0xff]
            %240 = vst [vmem:[%s208 + $0xb0] sm:$0xff] %v239
            %v241 = vld [vmem:[%s207 + $0xc0] sm:$0xff]
            %242 = vst [vmem:[%s208 + $0xc0] sm:$0xff] %v241
            %v243 = vld [vmem:[%s207 + $0xc8] sm:$0xff]
            %244 = vst [vmem:[%s208 + $0xc8] sm:$0xff] %v243
            %v245 = vld [vmem:[%s207 + $0xd8] sm:$0xff]
            %246 = vst [vmem:[%s208 + $0xd8] sm:$0xff] %v245
            %v247 = vld [vmem:[%s207 + $0xe0] sm:$0xff]
            %248 = vst [vmem:[%s208 + $0xe0] sm:$0xff] %v247
          $region45: #{tpu_custom_call.1} parent=39 // loop_footer
            %s206 = sadd.s32 1, %s202
          $region46: #{tpu_custom_call.1} parent=39 // loop_footer_branch
            %201 = sbr.rel target = $region42
          $region47: #{tpu_custom_call.1} parent=39 // loop_exit
            _
          %s250 = ssub.s32 4, 1
          loop: start=0, step=1, limit=1
          $region48: #{tpu_custom_call.1} parent=39 // loop_pre_header
            _
          $region49: #{tpu_custom_call.1} parent=39 // loop_header
            %s252 = sphi 0, %s256
            %p253 = scmp.ge.s32.totalorder %s252, 1
            %s257 = sphi %s199, %s199
            %s258 = sphi %s200, %s200
          $region50: #{tpu_custom_call.1} parent=39 // loop_header_branch
            %255 = sbr.rel (%p253) target = $region54
          $region51: #{tpu_custom_call.1} parent=39 // loop_body
            %v259 = vld [vmem:[%s257] sm:%s250]
            %260 = vst [vmem:[%s258] sm:%s250] %v259
            %v261 = vld [vmem:[%s257 + $0x18] sm:%s250]
            %262 = vst [vmem:[%s258 + $0x18] sm:%s250] %v261
            %v263 = vld [vmem:[%s257 + $0x30] sm:%s250]
            %264 = vst [vmem:[%s258 + $0x30] sm:%s250] %v263
            %v265 = vld [vmem:[%s257 + $0x48] sm:%s250]
            %266 = vst [vmem:[%s258 + $0x48] sm:%s250] %v265
            %v267 = vld [vmem:[%s257 + $0x60] sm:%s250]
            %268 = vst [vmem:[%s258 + $0x60] sm:%s250] %v267
            %v269 = vld [vmem:[%s257 + $0x78] sm:%s250]
            %270 = vst [vmem:[%s258 + $0x78] sm:%s250] %v269
            %v271 = vld [vmem:[%s257 + $0x90] sm:%s250]
            %272 = vst [vmem:[%s258 + $0x90] sm:%s250] %v271
            %v273 = vld [vmem:[%s257 + $0xa8] sm:%s250]
            %274 = vst [vmem:[%s258 + $0xa8] sm:%s250] %v273
            %v275 = vld [vmem:[%s257 + $0xc0] sm:%s250]
            %276 = vst [vmem:[%s258 + $0xc0] sm:%s250] %v275
            %v277 = vld [vmem:[%s257 + $0xd8] sm:%s250]
            %278 = vst [vmem:[%s258 + $0xd8] sm:%s250] %v277
          $region52: #{tpu_custom_call.1} parent=39 // loop_footer
            %s256 = sadd.s32 1, %s252
          $region53: #{tpu_custom_call.1} parent=39 // loop_footer_branch
            %251 = sbr.rel target = $region49
          $region54: #{tpu_custom_call.1} parent=39 // loop_exit
            _
        $region40: #{tpu_custom_call.1} parent=35 // pred_fallthru
          _
        // Predicated region
        $region55: #{tpu_custom_call.1} parent=35 // pred_check
          _
        $region56: #{tpu_custom_call.1} parent=35 // pred_check_branch
          %281 = sbr.rel (0) target = $region58
        $region57: #{tpu_custom_call.1} parent=35 // pred_region
          %282 = vsyncadd [#allocation3], 2880
        $region58: #{tpu_custom_call.1} parent=35 // pred_fallthru
          _
        %s283 = smul.u32 10, 18
        %s284 = smul.u32 %s283, 1
        %s285 = sshll.u32 %s284, 4
        %286 = dma.done [#allocation3], %s285
        %v287 = vld [vmem:[%s1] sm:$0x7]
        %v288 = vld [vmem:[%s1 + $0x4] sm:$0x7]
        %v289 = vld [vmem:[%s1 + $0x8] sm:$0x7]
        %v290 = vld [vmem:[#allocation2] sm:$0xff]
        %v291 = vld [vmem:[#allocation2 + $0x8] sm:$0xff]
        %v292 = vld [vmem:[#allocation2 + $0x18] sm:$0xff]
        %v293 = vld [vmem:[#allocation2 + $0x20] sm:$0xff]
        %v294 = vld [vmem:[#allocation2 + $0x30] sm:$0xff]
        %v295 = vld [vmem:[#allocation2 + $0x38] sm:$0xff]
        %v296 = vld [vmem:[#allocation2 + $0x48] sm:$0xff]
        %v297 = vld [vmem:[#allocation2 + $0x50] sm:$0xff]
        %v298 = vld [vmem:[#allocation2 + $0x60] sm:$0xff]
        %v299 = vld [vmem:[#allocation2 + $0x68] sm:$0xff]
        %v300 = vld [vmem:[#allocation2 + $0x78] sm:$0xff]
        %v301 = vld [vmem:[#allocation2 + $0x80] sm:$0xff]
        %v302 = vld [vmem:[#allocation2 + $0x90] sm:$0xff]
        %v303 = vld [vmem:[#allocation2 + $0x98] sm:$0xff]
        %v304 = vld [vmem:[#allocation2 + $0xa8] sm:$0xff]
        %v305 = vld [vmem:[#allocation2 + $0xb0] sm:$0xff]
        %v306 = vperm.slane %v287, 0
        %v307 = vmul.f32 %v290, %v306
        %v308 = vmul.f32 %v291, %v306
        %v309 = vmul.f32 %v292, %v306
        %v310 = vmul.f32 %v293, %v306
        %v311 = vmul.f32 %v294, %v306
        %v312 = vmul.f32 %v295, %v306
        %v313 = vmul.f32 %v296, %v306
        %v314 = vmul.f32 %v297, %v306
        %v315 = vmul.f32 %v298, %v306
        %v316 = vmul.f32 %v299, %v306
        %v317 = vmul.f32 %v300, %v306
        %v318 = vmul.f32 %v301, %v306
        %v319 = vmul.f32 %v302, %v306
        %v320 = vmul.f32 %v303, %v306
        %v321 = vmul.f32 %v304, %v306
        %v322 = vmul.f32 %v305, %v306
        %v323 = vadd.f32 %v307, 0.0
        %v324 = vadd.f32 %v308, 0.0
        %v325 = vadd.f32 %v309, 0.0
        %v326 = vadd.f32 %v310, 0.0
        %v327 = vadd.f32 %v311, 0.0
        %v328 = vadd.f32 %v312, 0.0
        %v329 = vadd.f32 %v313, 0.0
        %v330 = vadd.f32 %v314, 0.0
        %v331 = vadd.f32 %v315, 0.0
        %v332 = vadd.f32 %v316, 0.0
        %v333 = vadd.f32 %v317, 0.0
        %v334 = vadd.f32 %v318, 0.0
        %v335 = vadd.f32 %v319, 0.0
        %v336 = vadd.f32 %v320, 0.0
        %v337 = vadd.f32 %v321, 0.0
        %v338 = vadd.f32 %v322, 0.0
        %v339 = vld [vmem:[#allocation2 + $0x1] sm:$0xff]
        %v340 = vld [vmem:[#allocation2 + $0x9] sm:$0xff]
        %v341 = vld [vmem:[#allocation2 + $0x19] sm:$0xff]
        %v342 = vld [vmem:[#allocation2 + $0x21] sm:$0xff]
        %v343 = vld [vmem:[#allocation2 + $0x31] sm:$0xff]
        %v344 = vld [vmem:[#allocation2 + $0x39] sm:$0xff]
        %v345 = vld [vmem:[#allocation2 + $0x49] sm:$0xff]
        %v346 = vld [vmem:[#allocation2 + $0x51] sm:$0xff]
        %v347 = vld [vmem:[#allocation2 + $0x61] sm:$0xff]
        %v348 = vld [vmem:[#allocation2 + $0x69] sm:$0xff]
        %v349 = vld [vmem:[#allocation2 + $0x79] sm:$0xff]
        %v350 = vld [vmem:[#allocation2 + $0x81] sm:$0xff]
        %v351 = vld [vmem:[#allocation2 + $0x91] sm:$0xff]
        %v352 = vld [vmem:[#allocation2 + $0x99] sm:$0xff]
        %v353 = vld [vmem:[#allocation2 + $0xa9] sm:$0xff]
        %v354 = vld [vmem:[#allocation2 + $0xb1] sm:$0xff]
        %v355 = vperm.slane %v287, 1
        %v356 = vmul.f32 %v339, %v355
        %v357 = vmul.f32 %v340, %v355
        %v358 = vmul.f32 %v341, %v355
        %v359 = vmul.f32 %v342, %v355
        %v360 = vmul.f32 %v343, %v355
        %v361 = vmul.f32 %v344, %v355
        %v362 = vmul.f32 %v345, %v355
        %v363 = vmul.f32 %v346, %v355
        %v364 = vmul.f32 %v347, %v355
        %v365 = vmul.f32 %v348, %v355
        %v366 = vmul.f32 %v349, %v355
        %v367 = vmul.f32 %v350, %v355
        %v368 = vmul.f32 %v351, %v355
        %v369 = vmul.f32 %v352, %v355
        %v370 = vmul.f32 %v353, %v355
        %v371 = vmul.f32 %v354, %v355
        %v372 = vadd.f32 %v323, %v356
        %v373 = vadd.f32 %v324, %v357
        %v374 = vadd.f32 %v325, %v358
        %v375 = vadd.f32 %v326, %v359
        %v376 = vadd.f32 %v327, %v360
        %v377 = vadd.f32 %v328, %v361
        %v378 = vadd.f32 %v329, %v362
        %v379 = vadd.f32 %v330, %v363
        %v380 = vadd.f32 %v331, %v364
        %v381 = vadd.f32 %v332, %v365
        %v382 = vadd.f32 %v333, %v366
        %v383 = vadd.f32 %v334, %v367
        %v384 = vadd.f32 %v335, %v368
        %v385 = vadd.f32 %v336, %v369
        %v386 = vadd.f32 %v337, %v370
        %v387 = vadd.f32 %v338, %v371
        %v388 = vld [vmem:[#allocation2 + $0x2] sm:$0xff]
        %v389 = vld [vmem:[#allocation2 + $0xa] sm:$0xff]
        %v390 = vld [vmem:[#allocation2 + $0x1a] sm:$0xff]
        %v391 = vld [vmem:[#allocation2 + $0x22] sm:$0xff]
        %v392 = vld [vmem:[#allocation2 + $0x32] sm:$0xff]
        %v393 = vld [vmem:[#allocation2 + $0x3a] sm:$0xff]
        %v394 = vld [vmem:[#allocation2 + $0x4a] sm:$0xff]
        %v395 = vld [vmem:[#allocation2 + $0x52] sm:$0xff]
        %v396 = vld [vmem:[#allocation2 + $0x62] sm:$0xff]
        %v397 = vld [vmem:[#allocation2 + $0x6a] sm:$0xff]
        %v398 = vld [vmem:[#allocation2 + $0x7a] sm:$0xff]
        %v399 = vld [vmem:[#allocation2 + $0x82] sm:$0xff]
        %v400 = vld [vmem:[#allocation2 + $0x92] sm:$0xff]
        %v401 = vld [vmem:[#allocation2 + $0x9a] sm:$0xff]
        %v402 = vld [vmem:[#allocation2 + $0xaa] sm:$0xff]
        %v403 = vld [vmem:[#allocation2 + $0xb2] sm:$0xff]
        %v404 = vperm.slane %v287, 2
        %v405 = vmul.f32 %v388, %v404
        %v406 = vmul.f32 %v389, %v404
        %v407 = vmul.f32 %v390, %v404
        %v408 = vmul.f32 %v391, %v404
        %v409 = vmul.f32 %v392, %v404
        %v410 = vmul.f32 %v393, %v404
        %v411 = vmul.f32 %v394, %v404
        %v412 = vmul.f32 %v395, %v404
        %v413 = vmul.f32 %v396, %v404
        %v414 = vmul.f32 %v397, %v404
        %v415 = vmul.f32 %v398, %v404
        %v416 = vmul.f32 %v399, %v404
        %v417 = vmul.f32 %v400, %v404
        %v418 = vmul.f32 %v401, %v404
        %v419 = vmul.f32 %v402, %v404
        %v420 = vmul.f32 %v403, %v404
        %v421 = vadd.f32 %v372, %v405
        %v422 = vadd.f32 %v373, %v406
        %v423 = vadd.f32 %v374, %v407
        %v424 = vadd.f32 %v375, %v408
        %v425 = vadd.f32 %v376, %v409
        %v426 = vadd.f32 %v377, %v410
        %v427 = vadd.f32 %v378, %v411
        %v428 = vadd.f32 %v379, %v412
        %v429 = vadd.f32 %v380, %v413
        %v430 = vadd.f32 %v381, %v414
        %v431 = vadd.f32 %v382, %v415
        %v432 = vadd.f32 %v383, %v416
        %v433 = vadd.f32 %v384, %v417
        %v434 = vadd.f32 %v385, %v418
        %v435 = vadd.f32 %v386, %v419
        %v436 = vadd.f32 %v387, %v420
        %s437 = scalar_lea.vmem [#allocation2], 24
        %v438 = vld [vmem:[%s437] sm:$0xff]
        %v439 = vld [vmem:[%s437 + $0x8] sm:$0xff]
        %v440 = vld [vmem:[%s437 + $0x18] sm:$0xff]
        %v441 = vld [vmem:[%s437 + $0x20] sm:$0xff]
        %v442 = vld [vmem:[%s437 + $0x30] sm:$0xff]
        %v443 = vld [vmem:[%s437 + $0x38] sm:$0xff]
        %v444 = vld [vmem:[%s437 + $0x48] sm:$0xff]
        %v445 = vld [vmem:[%s437 + $0x50] sm:$0xff]
        %v446 = vld [vmem:[%s437 + $0x60] sm:$0xff]
        %v447 = vld [vmem:[%s437 + $0x68] sm:$0xff]
        %v448 = vld [vmem:[%s437 + $0x78] sm:$0xff]
        %v449 = vld [vmem:[%s437 + $0x80] sm:$0xff]
        %v450 = vld [vmem:[%s437 + $0x90] sm:$0xff]
        %v451 = vld [vmem:[%s437 + $0x98] sm:$0xff]
        %v452 = vld [vmem:[%s437 + $0xa8] sm:$0xff]
        %v453 = vld [vmem:[%s437 + $0xb0] sm:$0xff]
        %v454 = vperm.slane %v288, 0
        %v455 = vmul.f32 %v438, %v454
        %v456 = vmul.f32 %v439, %v454
        %v457 = vmul.f32 %v440, %v454
        %v458 = vmul.f32 %v441, %v454
        %v459 = vmul.f32 %v442, %v454
        %v460 = vmul.f32 %v443, %v454
        %v461 = vmul.f32 %v444, %v454
        %v462 = vmul.f32 %v445, %v454
        %v463 = vmul.f32 %v446, %v454
        %v464 = vmul.f32 %v447, %v454
        %v465 = vmul.f32 %v448, %v454
        %v466 = vmul.f32 %v449, %v454
        %v467 = vmul.f32 %v450, %v454
        %v468 = vmul.f32 %v451, %v454
        %v469 = vmul.f32 %v452, %v454
        %v470 = vmul.f32 %v453, %v454
        %v471 = vadd.f32 %v421, %v455
        %v472 = vadd.f32 %v422, %v456
        %v473 = vadd.f32 %v423, %v457
        %v474 = vadd.f32 %v424, %v458
        %v475 = vadd.f32 %v425, %v459
        %v476 = vadd.f32 %v426, %v460
        %v477 = vadd.f32 %v427, %v461
        %v478 = vadd.f32 %v428, %v462
        %v479 = vadd.f32 %v429, %v463
        %v480 = vadd.f32 %v430, %v464
        %v481 = vadd.f32 %v431, %v465
        %v482 = vadd.f32 %v432, %v466
        %v483 = vadd.f32 %v433, %v467
        %v484 = vadd.f32 %v434, %v468
        %v485 = vadd.f32 %v435, %v469
        %v486 = vadd.f32 %v436, %v470
        %v487 = vld [vmem:[%s437 + $0x1] sm:$0xff]
        %v488 = vld [vmem:[%s437 + $0x9] sm:$0xff]
        %v489 = vld [vmem:[%s437 + $0x19] sm:$0xff]
        %v490 = vld [vmem:[%s437 + $0x21] sm:$0xff]
        %v491 = vld [vmem:[%s437 + $0x31] sm:$0xff]
        %v492 = vld [vmem:[%s437 + $0x39] sm:$0xff]
        %v493 = vld [vmem:[%s437 + $0x49] sm:$0xff]
        %v494 = vld [vmem:[%s437 + $0x51] sm:$0xff]
        %v495 = vld [vmem:[%s437 + $0x61] sm:$0xff]
        %v496 = vld [vmem:[%s437 + $0x69] sm:$0xff]
        %v497 = vld [vmem:[%s437 + $0x79] sm:$0xff]
        %v498 = vld [vmem:[%s437 + $0x81] sm:$0xff]
        %v499 = vld [vmem:[%s437 + $0x91] sm:$0xff]
        %v500 = vld [vmem:[%s437 + $0x99] sm:$0xff]
        %v501 = vld [vmem:[%s437 + $0xa9] sm:$0xff]
        %v502 = vld [vmem:[%s437 + $0xb1] sm:$0xff]
        %v503 = vperm.slane %v288, 1
        %v504 = vmul.f32 %v487, %v503
        %v505 = vmul.f32 %v488, %v503
        %v506 = vmul.f32 %v489, %v503
        %v507 = vmul.f32 %v490, %v503
        %v508 = vmul.f32 %v491, %v503
        %v509 = vmul.f32 %v492, %v503
        %v510 = vmul.f32 %v493, %v503
        %v511 = vmul.f32 %v494, %v503
        %v512 = vmul.f32 %v495, %v503
        %v513 = vmul.f32 %v496, %v503
        %v514 = vmul.f32 %v497, %v503
        %v515 = vmul.f32 %v498, %v503
        %v516 = vmul.f32 %v499, %v503
        %v517 = vmul.f32 %v500, %v503
        %v518 = vmul.f32 %v501, %v503
        %v519 = vmul.f32 %v502, %v503
        %v520 = vadd.f32 %v471, %v504
        %v521 = vadd.f32 %v472, %v505
        %v522 = vadd.f32 %v473, %v506
        %v523 = vadd.f32 %v474, %v507
        %v524 = vadd.f32 %v475, %v508
        %v525 = vadd.f32 %v476, %v509
        %v526 = vadd.f32 %v477, %v510
        %v527 = vadd.f32 %v478, %v511
        %v528 = vadd.f32 %v479, %v512
        %v529 = vadd.f32 %v480, %v513
        %v530 = vadd.f32 %v481, %v514
        %v531 = vadd.f32 %v482, %v515
        %v532 = vadd.f32 %v483, %v516
        %v533 = vadd.f32 %v484, %v517
        %v534 = vadd.f32 %v485, %v518
        %v535 = vadd.f32 %v486, %v519
        %v536 = vld [vmem:[%s437 + $0x2] sm:$0xff]
        %v537 = vld [vmem:[%s437 + $0xa] sm:$0xff]
        %v538 = vld [vmem:[%s437 + $0x1a] sm:$0xff]
        %v539 = vld [vmem:[%s437 + $0x22] sm:$0xff]
        %v540 = vld [vmem:[%s437 + $0x32] sm:$0xff]
        %v541 = vld [vmem:[%s437 + $0x3a] sm:$0xff]
        %v542 = vld [vmem:[%s437 + $0x4a] sm:$0xff]
        %v543 = vld [vmem:[%s437 + $0x52] sm:$0xff]
        %v544 = vld [vmem:[%s437 + $0x62] sm:$0xff]
        %v545 = vld [vmem:[%s437 + $0x6a] sm:$0xff]
        %v546 = vld [vmem:[%s437 + $0x7a] sm:$0xff]
        %v547 = vld [vmem:[%s437 + $0x82] sm:$0xff]
        %v548 = vld [vmem:[%s437 + $0x92] sm:$0xff]
        %v549 = vld [vmem:[%s437 + $0x9a] sm:$0xff]
        %v550 = vld [vmem:[%s437 + $0xaa] sm:$0xff]
        %v551 = vld [vmem:[%s437 + $0xb2] sm:$0xff]
        %v552 = vperm.slane %v288, 2
        %v553 = vmul.f32 %v536, %v552
        %v554 = vmul.f32 %v537, %v552
        %v555 = vmul.f32 %v538, %v552
        %v556 = vmul.f32 %v539, %v552
        %v557 = vmul.f32 %v540, %v552
        %v558 = vmul.f32 %v541, %v552
        %v559 = vmul.f32 %v542, %v552
        %v560 = vmul.f32 %v543, %v552
        %v561 = vmul.f32 %v544, %v552
        %v562 = vmul.f32 %v545, %v552
        %v563 = vmul.f32 %v546, %v552
        %v564 = vmul.f32 %v547, %v552
        %v565 = vmul.f32 %v548, %v552
        %v566 = vmul.f32 %v549, %v552
        %v567 = vmul.f32 %v550, %v552
        %v568 = vmul.f32 %v551, %v552
        %v569 = vadd.f32 %v520, %v553
        %v570 = vadd.f32 %v521, %v554
        %v571 = vadd.f32 %v522, %v555
        %v572 = vadd.f32 %v523, %v556
        %v573 = vadd.f32 %v524, %v557
        %v574 = vadd.f32 %v525, %v558
        %v575 = vadd.f32 %v526, %v559
        %v576 = vadd.f32 %v527, %v560
        %v577 = vadd.f32 %v528, %v561
        %v578 = vadd.f32 %v529, %v562
        %v579 = vadd.f32 %v530, %v563
        %v580 = vadd.f32 %v531, %v564
        %v581 = vadd.f32 %v532, %v565
        %v582 = vadd.f32 %v533, %v566
        %v583 = vadd.f32 %v534, %v567
        %v584 = vadd.f32 %v535, %v568
        %s585 = scalar_lea.vmem [#allocation2], 48
        %v586 = vld [vmem:[%s585] sm:$0xff]
        %v587 = vld [vmem:[%s585 + $0x8] sm:$0xff]
        %v588 = vld [vmem:[%s585 + $0x18] sm:$0xff]
        %v589 = vld [vmem:[%s585 + $0x20] sm:$0xff]
        %v590 = vld [vmem:[%s585 + $0x30] sm:$0xff]
        %v591 = vld [vmem:[%s585 + $0x38] sm:$0xff]
        %v592 = vld [vmem:[%s585 + $0x48] sm:$0xff]
        %v593 = vld [vmem:[%s585 + $0x50] sm:$0xff]
        %v594 = vld [vmem:[%s585 + $0x60] sm:$0xff]
        %v595 = vld [vmem:[%s585 + $0x68] sm:$0xff]
        %v596 = vld [vmem:[%s585 + $0x78] sm:$0xff]
        %v597 = vld [vmem:[%s585 + $0x80] sm:$0xff]
        %v598 = vld [vmem:[%s585 + $0x90] sm:$0xff]
        %v599 = vld [vmem:[%s585 + $0x98] sm:$0xff]
        %v600 = vld [vmem:[%s585 + $0xa8] sm:$0xff]
        %v601 = vld [vmem:[%s585 + $0xb0] sm:$0xff]
        %v602 = vperm.slane %v289, 0
        %v603 = vmul.f32 %v586, %v602
        %v604 = vmul.f32 %v587, %v602
        %v605 = vmul.f32 %v588, %v602
        %v606 = vmul.f32 %v589, %v602
        %v607 = vmul.f32 %v590, %v602
        %v608 = vmul.f32 %v591, %v602
        %v609 = vmul.f32 %v592, %v602
        %v610 = vmul.f32 %v593, %v602
        %v611 = vmul.f32 %v594, %v602
        %v612 = vmul.f32 %v595, %v602
        %v613 = vmul.f32 %v596, %v602
        %v614 = vmul.f32 %v597, %v602
        %v615 = vmul.f32 %v598, %v602
        %v616 = vmul.f32 %v599, %v602
        %v617 = vmul.f32 %v600, %v602
        %v618 = vmul.f32 %v601, %v602
        %v619 = vadd.f32 %v569, %v603
        %v620 = vadd.f32 %v570, %v604
        %v621 = vadd.f32 %v571, %v605
        %v622 = vadd.f32 %v572, %v606
        %v623 = vadd.f32 %v573, %v607
        %v624 = vadd.f32 %v574, %v608
        %v625 = vadd.f32 %v575, %v609
        %v626 = vadd.f32 %v576, %v610
        %v627 = vadd.f32 %v577, %v611
        %v628 = vadd.f32 %v578, %v612
        %v629 = vadd.f32 %v579, %v613
        %v630 = vadd.f32 %v580, %v614
        %v631 = vadd.f32 %v581, %v615
        %v632 = vadd.f32 %v582, %v616
        %v633 = vadd.f32 %v583, %v617
        %v634 = vadd.f32 %v584, %v618
        %v635 = vld [vmem:[%s585 + $0x1] sm:$0xff]
        %v636 = vld [vmem:[%s585 + $0x9] sm:$0xff]
        %v637 = vld [vmem:[%s585 + $0x19] sm:$0xff]
        %v638 = vld [vmem:[%s585 + $0x21] sm:$0xff]
        %v639 = vld [vmem:[%s585 + $0x31] sm:$0xff]
        %v640 = vld [vmem:[%s585 + $0x39] sm:$0xff]
        %v641 = vld [vmem:[%s585 + $0x49] sm:$0xff]
        %v642 = vld [vmem:[%s585 + $0x51] sm:$0xff]
        %v643 = vld [vmem:[%s585 + $0x61] sm:$0xff]
        %v644 = vld [vmem:[%s585 + $0x69] sm:$0xff]
        %v645 = vld [vmem:[%s585 + $0x79] sm:$0xff]
        %v646 = vld [vmem:[%s585 + $0x81] sm:$0xff]
        %v647 = vld [vmem:[%s585 + $0x91] sm:$0xff]
        %v648 = vld [vmem:[%s585 + $0x99] sm:$0xff]
        %v649 = vld [vmem:[%s585 + $0xa9] sm:$0xff]
        %v650 = vld [vmem:[%s585 + $0xb1] sm:$0xff]
        %v651 = vperm.slane %v289, 1
        %v652 = vmul.f32 %v635, %v651
        %v653 = vmul.f32 %v636, %v651
        %v654 = vmul.f32 %v637, %v651
        %v655 = vmul.f32 %v638, %v651
        %v656 = vmul.f32 %v639, %v651
        %v657 = vmul.f32 %v640, %v651
        %v658 = vmul.f32 %v641, %v651
        %v659 = vmul.f32 %v642, %v651
        %v660 = vmul.f32 %v643, %v651
        %v661 = vmul.f32 %v644, %v651
        %v662 = vmul.f32 %v645, %v651
        %v663 = vmul.f32 %v646, %v651
        %v664 = vmul.f32 %v647, %v651
        %v665 = vmul.f32 %v648, %v651
        %v666 = vmul.f32 %v649, %v651
        %v667 = vmul.f32 %v650, %v651
        %v668 = vadd.f32 %v619, %v652
        %v669 = vadd.f32 %v620, %v653
        %v670 = vadd.f32 %v621, %v654
        %v671 = vadd.f32 %v622, %v655
        %v672 = vadd.f32 %v623, %v656
        %v673 = vadd.f32 %v624, %v657
        %v674 = vadd.f32 %v625, %v658
        %v675 = vadd.f32 %v626, %v659
        %v676 = vadd.f32 %v627, %v660
        %v677 = vadd.f32 %v628, %v661
        %v678 = vadd.f32 %v629, %v662
        %v679 = vadd.f32 %v630, %v663
        %v680 = vadd.f32 %v631, %v664
        %v681 = vadd.f32 %v632, %v665
        %v682 = vadd.f32 %v633, %v666
        %v683 = vadd.f32 %v634, %v667
        %v684 = vld [vmem:[%s585 + $0x2] sm:$0xff]
        %v685 = vld [vmem:[%s585 + $0xa] sm:$0xff]
        %v686 = vld [vmem:[%s585 + $0x1a] sm:$0xff]
        %v687 = vld [vmem:[%s585 + $0x22] sm:$0xff]
        %v688 = vld [vmem:[%s585 + $0x32] sm:$0xff]
        %v689 = vld [vmem:[%s585 + $0x3a] sm:$0xff]
        %v690 = vld [vmem:[%s585 + $0x4a] sm:$0xff]
        %v691 = vld [vmem:[%s585 + $0x52] sm:$0xff]
        %v692 = vld [vmem:[%s585 + $0x62] sm:$0xff]
        %v693 = vld [vmem:[%s585 + $0x6a] sm:$0xff]
        %v694 = vld [vmem:[%s585 + $0x7a] sm:$0xff]
        %v695 = vld [vmem:[%s585 + $0x82] sm:$0xff]
        %v696 = vld [vmem:[%s585 + $0x92] sm:$0xff]
        %v697 = vld [vmem:[%s585 + $0x9a] sm:$0xff]
        %v698 = vld [vmem:[%s585 + $0xaa] sm:$0xff]
        %v699 = vld [vmem:[%s585 + $0xb2] sm:$0xff]
        %v700 = vperm.slane %v289, 2
        %v701 = vmul.f32 %v684, %v700
        %v702 = vmul.f32 %v685, %v700
        %v703 = vmul.f32 %v686, %v700
        %v704 = vmul.f32 %v687, %v700
        %v705 = vmul.f32 %v688, %v700
        %v706 = vmul.f32 %v689, %v700
        %v707 = vmul.f32 %v690, %v700
        %v708 = vmul.f32 %v691, %v700
        %v709 = vmul.f32 %v692, %v700
        %v710 = vmul.f32 %v693, %v700
        %v711 = vmul.f32 %v694, %v700
        %v712 = vmul.f32 %v695, %v700
        %v713 = vmul.f32 %v696, %v700
        %v714 = vmul.f32 %v697, %v700
        %v715 = vmul.f32 %v698, %v700
        %v716 = vmul.f32 %v699, %v700
        %v717 = vadd.f32 %v668, %v701
        %v718 = vadd.f32 %v669, %v702
        %v719 = vadd.f32 %v670, %v703
        %v720 = vadd.f32 %v671, %v704
        %v721 = vadd.f32 %v672, %v705
        %v722 = vadd.f32 %v673, %v706
        %v723 = vadd.f32 %v674, %v707
        %v724 = vadd.f32 %v675, %v708
        %v725 = vadd.f32 %v676, %v709
        %v726 = vadd.f32 %v677, %v710
        %v727 = vadd.f32 %v678, %v711
        %v728 = vadd.f32 %v679, %v712
        %v729 = vadd.f32 %v680, %v713
        %v730 = vadd.f32 %v681, %v714
        %v731 = vadd.f32 %v682, %v715
        %v732 = vadd.f32 %v683, %v716
        %v733 = vld [vmem:[%s2] sm:$0x1]
        %v735 = vperm.slane %v733, 0
        %v737 = vadd.f32 %v717, %v735
        %v738 = vadd.f32 %v718, %v735
        %v739 = vadd.f32 %v719, %v735
        %v740 = vadd.f32 %v720, %v735
        %v741 = vadd.f32 %v721, %v735
        %v742 = vadd.f32 %v722, %v735
        %v743 = vadd.f32 %v723, %v735
        %v744 = vadd.f32 %v724, %v735
        %v745 = vadd.f32 %v725, %v735
        %v746 = vadd.f32 %v726, %v735
        %v747 = vadd.f32 %v727, %v735
        %v748 = vadd.f32 %v728, %v735
        %v749 = vadd.f32 %v729, %v735
        %v750 = vadd.f32 %v730, %v735
        %v751 = vadd.f32 %v731, %v735
        %v752 = vadd.f32 %v732, %v735
        %v753 = vmax.f32 %v737, 0.0
        %v754 = vmax.f32 %v738, 0.0
        %v755 = vmax.f32 %v739, 0.0
        %v756 = vmax.f32 %v740, 0.0
        %v757 = vmax.f32 %v741, 0.0
        %v758 = vmax.f32 %v742, 0.0
        %v759 = vmax.f32 %v743, 0.0
        %v760 = vmax.f32 %v744, 0.0
        %v761 = vmax.f32 %v745, 0.0
        %v762 = vmax.f32 %v746, 0.0
        %v763 = vmax.f32 %v747, 0.0
        %v764 = vmax.f32 %v748, 0.0
        %v765 = vmax.f32 %v749, 0.0
        %v766 = vmax.f32 %v750, 0.0
        %v767 = vmax.f32 %v751, 0.0
        %v768 = vmax.f32 %v752, 0.0
        %v769 = vld [vmem:[%s3] sm:$0xff]
        %v770 = vld [vmem:[%s3 + $0x8] sm:$0xff]
        %v771 = vld [vmem:[%s3 + $0x10] sm:$0xff]
        %v772 = vld [vmem:[%s3 + $0x18] sm:$0xff]
        %v773 = vld [vmem:[%s3 + $0x20] sm:$0xff]
        %v774 = vld [vmem:[%s3 + $0x28] sm:$0xff]
        %v775 = vld [vmem:[%s3 + $0x30] sm:$0xff]
        %v776 = vld [vmem:[%s3 + $0x38] sm:$0xff]
        %v777 = vld [vmem:[%s3 + $0x40] sm:$0xff]
        %v778 = vld [vmem:[%s3 + $0x48] sm:$0xff]
        %v779 = vld [vmem:[%s3 + $0x50] sm:$0xff]
        %v780 = vld [vmem:[%s3 + $0x58] sm:$0xff]
        %v781 = vld [vmem:[%s3 + $0x60] sm:$0xff]
        %v782 = vld [vmem:[%s3 + $0x68] sm:$0xff]
        %v783 = vld [vmem:[%s3 + $0x70] sm:$0xff]
        %v784 = vld [vmem:[%s3 + $0x78] sm:$0xff]
        %v785 = vld [vmem:[%s4] sm:$0x1]
        %v787 = vperm.slane %v785, 0
        %789 = vmatpush.msra.mxu0 %v784
        %790 = vmatpush.msra.mxu0 %v783
        %791 = vmatpush.msra.mxu0 %v782
        %792 = vmatpush.msra.mxu0 %v781
        %793 = vmatpush.msra.mxu0 %v780
        %794 = vmatpush.msra.mxu0 %v779
        %795 = vmatpush.msra.mxu0 %v778
        %796 = vmatpush.msra.mxu0 %v777
        %797 = vmatpush.msra.mxu0 %v776
        %798 = vmatpush.msra.mxu0 %v775
        %799 = vmatpush.msra.mxu0 %v774
        %800 = vmatpush.msra.mxu0 %v773
        %801 = vmatpush.msra.mxu0 %v772
        %802 = vmatpush.msra.mxu0 %v771
        %803 = vmatpush.msra.mxu0 %v770
        %804 = vmatpush.msra.mxu0 %v769
        %805 = vmatmul.f32.gmra.mxu0 %v753
        %v806 = vpop.f32.mrf.mxu0
        %v807 = vadd.f32 %v787, %v806
        %808 = vmatmul.f32.gmra.mxu0 %v754
        %v809 = vpop.f32.mrf.mxu0
        %v810 = vadd.f32 %v787, %v809
        %811 = vmatmul.f32.gmra.mxu0 %v755
        %v812 = vpop.f32.mrf.mxu0
        %v813 = vadd.f32 %v787, %v812
        %814 = vmatmul.f32.gmra.mxu0 %v756
        %v815 = vpop.f32.mrf.mxu0
        %v816 = vadd.f32 %v787, %v815
        %817 = vmatmul.f32.gmra.mxu0 %v757
        %v818 = vpop.f32.mrf.mxu0
        %v819 = vadd.f32 %v787, %v818
        %820 = vmatmul.f32.gmra.mxu0 %v758
        %v821 = vpop.f32.mrf.mxu0
        %v822 = vadd.f32 %v787, %v821
        %823 = vmatmul.f32.gmra.mxu0 %v759
        %v824 = vpop.f32.mrf.mxu0
        %v825 = vadd.f32 %v787, %v824
        %826 = vmatmul.f32.gmra.mxu0 %v760
        %v827 = vpop.f32.mrf.mxu0
        %v828 = vadd.f32 %v787, %v827
        %829 = vmatmul.f32.gmra.mxu0 %v761
        %v830 = vpop.f32.mrf.mxu0
        %v831 = vadd.f32 %v787, %v830
        %832 = vmatmul.f32.gmra.mxu0 %v762
        %v833 = vpop.f32.mrf.mxu0
        %v834 = vadd.f32 %v787, %v833
        %835 = vmatmul.f32.gmra.mxu0 %v763
        %v836 = vpop.f32.mrf.mxu0
        %v837 = vadd.f32 %v787, %v836
        %838 = vmatmul.f32.gmra.mxu0 %v764
        %v839 = vpop.f32.mrf.mxu0
        %v840 = vadd.f32 %v787, %v839
        %841 = vmatmul.f32.gmra.mxu0 %v765
        %v842 = vpop.f32.mrf.mxu0
        %v843 = vadd.f32 %v787, %v842
        %844 = vmatmul.f32.gmra.mxu0 %v766
        %v845 = vpop.f32.mrf.mxu0
        %v846 = vadd.f32 %v787, %v845
        %847 = vmatmul.f32.gmra.mxu0 %v767
        %v848 = vpop.f32.mrf.mxu0
        %v849 = vadd.f32 %v787, %v848
        %850 = vmatmul.f32.gmra.mxu0 %v768
        %v851 = vpop.f32.mrf.mxu0
        %v852 = vadd.f32 %v787, %v851
        %853 = vdwg.mxu0
        %v854 = vmax.f32 %v807, 0.0
        %v855 = vmax.f32 %v810, 0.0
        %v856 = vmax.f32 %v813, 0.0
        %v857 = vmax.f32 %v816, 0.0
        %v858 = vmax.f32 %v819, 0.0
        %v859 = vmax.f32 %v822, 0.0
        %v860 = vmax.f32 %v825, 0.0
        %v861 = vmax.f32 %v828, 0.0
        %v862 = vmax.f32 %v831, 0.0
        %v863 = vmax.f32 %v834, 0.0
        %v864 = vmax.f32 %v837, 0.0
        %v865 = vmax.f32 %v840, 0.0
        %v866 = vmax.f32 %v843, 0.0
        %v867 = vmax.f32 %v846, 0.0
        %v868 = vmax.f32 %v849, 0.0
        %v869 = vmax.f32 %v852, 0.0
        %870 = vst [vmem:[%s190] sm:$0xff] %v854
        %871 = vst [vmem:[%s190 + $0x8] sm:$0xff] %v855
        %872 = vst [vmem:[%s190 + $0x10] sm:$0xff] %v856
        %873 = vst [vmem:[%s190 + $0x18] sm:$0xff] %v857
        %874 = vst [vmem:[%s190 + $0x20] sm:$0xff] %v858
        %875 = vst [vmem:[%s190 + $0x28] sm:$0xff] %v859
        %876 = vst [vmem:[%s190 + $0x30] sm:$0xff] %v860
        %877 = vst [vmem:[%s190 + $0x38] sm:$0xff] %v861
        %878 = vst [vmem:[%s190 + $0x40] sm:$0xff] %v862
        %879 = vst [vmem:[%s190 + $0x48] sm:$0xff] %v863
        %880 = vst [vmem:[%s190 + $0x50] sm:$0xff] %v864
        %881 = vst [vmem:[%s190 + $0x58] sm:$0xff] %v865
        %882 = vst [vmem:[%s190 + $0x60] sm:$0xff] %v866
        %883 = vst [vmem:[%s190 + $0x68] sm:$0xff] %v867
        %884 = vst [vmem:[%s190 + $0x70] sm:$0xff] %v868
        %885 = vst [vmem:[%s190 + $0x78] sm:$0xff] %v869
        %s886 = sand.u32 %s125, 1
        %s887 = scalar_lea.sflag [#allocation5], %s886
        %s888 = sand.u32 %s125, 1
        %s889 = smul.addr %s888, 128
        %s890 = scalar_lea.vmem [#allocation4], %s889
        // Predicated region
        $region59: #{tpu_custom_call.1} parent=35 // pred_check
          %p891 = pneg %p135
        $region60: #{tpu_custom_call.1} parent=35 // pred_check_branch
          %893 = sbr.rel (%p891) target = $region62
        $region61: #{tpu_custom_call.1} parent=35 // pred_region
          %s894 = smul.u32 8, %s24
          %896 = vsyncadd %s887, 0
          %s897 = smul.addr %s894, 2
          %s898 = smul.addr %s23, 32
          %s899 = sadd.s32 %s897, %s898
          %s900 = smul.addr %s899, 8
          %s901 = scalar_lea.hbm %s5, %s900
          %s902 = sshll.u32 %s890, 4
          %s903 = int_to_ptr.vmem [resolvable:$true] %s902
          %s904 = sshll.u32 %s901, 4
          %s905 = int_to_ptr.hbm [resolvable:$true] %s904
          %910 = dma.vmem_to_hbm [thread:$0]  %s903, 2048, %s905, %s887, 128, 128, 8
        $region62: #{tpu_custom_call.1} parent=35 // pred_fallthru
          _
      $region36: #{tpu_custom_call.1} parent=5 // pred_fallthru
        _
      %p911 = scmp.le.s32.totalorder 2, %s14
      // Predicated region
      $region63: #{tpu_custom_call.1} parent=5 // pred_check
        %p912 = pneg %p911
      $region64: #{tpu_custom_call.1} parent=5 // pred_check_branch
        %914 = sbr.rel (%p912) target = $region66
      $region65: #{tpu_custom_call.1} parent=5 // pred_region
        %s915 = ssub.s32 %s14, 2
        // Predicated region
        $region67: #{tpu_custom_call.1} parent=65 // pred_check
          %p916 = pneg %p141
        $region68: #{tpu_custom_call.1} parent=65 // pred_check_branch
          %918 = sbr.rel (%p916) target = $region70
        $region69: #{tpu_custom_call.1} parent=65 // pred_region
          %s919 = sand.u32 %s126, 1
          %s920 = scalar_lea.sflag [#allocation5], %s919
          %s921 = sand.u32 %s126, 1
          %s922 = smul.addr %s921, 128
          %s923 = scalar_lea.vmem [#allocation4], %s922
          %925 = dma.done %s920, 2048
        $region70: #{tpu_custom_call.1} parent=65 // pred_fallthru
          _
      $region66: #{tpu_custom_call.1} parent=5 // pred_fallthru
        _
    $region6: #{tpu_custom_call.1} parent=1 // loop_footer
      %s18 = sadd.s32 1, %s14
    $region7: #{tpu_custom_call.1} parent=1 // loop_footer_branch
      %13 = sbr.rel target = $region3
    $region8: #{tpu_custom_call.1} parent=1 // loop_exit
      _
    %926 = vsyncpa [#allocation5], 1
    %s927 = scalar_lea.sflag [#allocation5], 1
    %928 = vsyncpa %s927, 1
  %929 = vsyncmov [#allocation3]
  %s930 = vpop.sfrf %929
  %p931 = scmp.eq.s32.totalorder %s930, 0
  %p932 = pneg %p931
  %934 = shalt.err (%p932)

</llo_original>
